<compile_context>
chip_gen: v7x
topology: tpu7x:2x2x1
jax: 0.10.0
libtpu: 0.0.40
codegen_flags: <defaults>
</compile_context>

<pallas_src>
import jax
import jax.numpy as jnp
from jax.experimental import pallas as pl
from jax.experimental.pallas import tpu as pltpu

DISTILBERT_HIDDEN = 768  # configuration.hidden_size for DistilBertConfig()
_LANE = 128


def _round_up(n, m):
    return ((n + m - 1) // m) * m


def _adversary_kernel(x_ref, w1_ref, b1_ref, w2_ref, b2_ref, out_ref):
    # x_ref : (TB, 768)        x.dtype VMEM (streamed per grid step)
    # w1_ref: (768, H_pad)     weight dtype VMEM (resident across grid)
    # b1_ref: (1, H_pad)       f32 VMEM (resident)
    # w2_ref: (H_pad, P_pad)   weight dtype VMEM (resident)
    # b2_ref: (1, P_pad)       f32 VMEM (resident)
    # out_ref: (TB, P_pad)     out dtype VMEM
    x = x_ref[...].astype(w1_ref.dtype)            # no-op when dtypes match
    h = jnp.dot(x, w1_ref[...], preferred_element_type=jnp.float32)
    h = jnp.maximum(h + b1_ref[...], 0.0)          # bias + ReLU in f32
    out = jnp.dot(h.astype(w2_ref.dtype), w2_ref[...],
                  preferred_element_type=jnp.float32) + b2_ref[...]
    out_ref[...] = out.astype(out_ref.dtype)


def prepare_adversary_params(w1, b1, w2, b2, *, param_dtype=None):
    """Pad feature dims to lane (128) multiples. Call ONCE and reuse the result
    across forward calls / training steps (keeps padding off the per-call path).

    Weights are stored transposed vs. PyTorch, i.e. (in_features, out_features).
    Use param_dtype=jnp.bfloat16 only when the activations also arrive in bf16.
    """
    D, H = w1.shape
    P = w2.shape[1]
    if param_dtype is None:
        param_dtype = w1.dtype
    H_pad = _round_up(H, _LANE)
    P_pad = _round_up(P, _LANE)
    w1_p = jnp.zeros((D, H_pad), param_dtype).at[:, :H].set(w1.astype(param_dtype))
    b1_p = jnp.zeros((1, H_pad), jnp.float32).at[0, :H].set(b1.astype(jnp.float32))
    w2_p = jnp.zeros((H_pad, P_pad), param_dtype).at[:H, :P].set(w2.astype(param_dtype))
    b2_p = jnp.zeros((1, P_pad), jnp.float32).at[0, :P].set(b2.astype(jnp.float32))
    return w1_p, b1_p, w2_p, b2_p


def adversary_forward(x, w1_p, b1_p, w2_p, b2_p, num_protected_label,
                      *, block_batch=1024, out_dtype=jnp.float32):
    """x: (B, 768) streamed as-is (f32 or bf16). Padded params from
    prepare_adversary_params. Returns (B, num_protected_label) in out_dtype."""
    B, D = x.shape
    H_pad = w1_p.shape[1]
    P_pad = w2_p.shape[1]

    # Sublane multiple for x's dtype (bf16 packs 16 rows per vreg).
    sub = 16 if x.dtype == jnp.bfloat16 else 8

    # Tiny pad only when B is not already a sublane multiple (<= sub-1 rows);
    # never pad up to a full tile.
    B_pad = _round_up(B, sub)
    if B_pad != B:
        x = jnp.pad(x, ((0, B_pad - B), (0, 0)))

    TB = min(_round_up(block_batch, sub), B_pad)
    grid = (pl.cdiv(B_pad, TB),)

    flops = 2 * B * (D * H_pad + H_pad * P_pad)
    bytes_accessed = (B * D * x.dtype.itemsize
                      + w1_p.size * w1_p.dtype.itemsize
                      + w2_p.size * w2_p.dtype.itemsize
                      + (b1_p.size + b2_p.size) * 4
                      + B * P_pad * jnp.dtype(out_dtype).itemsize)

    out = pl.pallas_call(
        _adversary_kernel,
        out_shape=jax.ShapeDtypeStruct((B_pad, P_pad), out_dtype),
        grid=grid,
        in_specs=[
            # Streamed x tile; last block may be ragged (masked DMA).
            pl.BlockSpec((TB, D), lambda i: (i, 0)),
            # Weights/biases keep block index (0, 0) across steps -> fetched
            # once, VMEM-resident for the whole grid.
            pl.BlockSpec((D, H_pad), lambda i: (0, 0)),
            pl.BlockSpec((1, H_pad), lambda i: (0, 0)),
            pl.BlockSpec((H_pad, P_pad), lambda i: (0, 0)),
            pl.BlockSpec((1, P_pad), lambda i: (0, 0)),
        ],
        out_specs=pl.BlockSpec((TB, P_pad), lambda i: (i, 0)),
        compiler_params=pltpu.CompilerParams(
            dimension_semantics=("parallel",),
        ),
        cost_estimate=pl.CostEstimate(flops=flops, transcendentals=0,
                                      bytes_accessed=bytes_accessed),
    )(x, w1_p, b1_p, w2_p, b2_p)
    return out[:B, :num_protected_label]


def init_adversary_params(key, num_protected_label, hidden_size):
    """Deterministic init matching nn.Linear default (uniform +-1/sqrt(fan_in)).
    Weights stored as (in_features, out_features) for the kernel."""
    k1, k2, k3, k4 = jax.random.split(key, 4)
    bound1 = 1.0 / (DISTILBERT_HIDDEN ** 0.5)
    bound2 = 1.0 / (hidden_size ** 0.5)
    w1 = jax.random.uniform(k1, (DISTILBERT_HIDDEN, hidden_size),
                            jnp.float32, -bound1, bound1)
    b1 = jax.random.uniform(k2, (hidden_size,), jnp.float32, -bound1, bound1)
    w2 = jax.random.uniform(k3, (hidden_size, num_protected_label),
                            jnp.float32, -bound2, bound2)
    b2 = jax.random.uniform(k4, (num_protected_label,), jnp.float32, -bound2, bound2)
    return w1, b1, w2, b2


if __name__ == "__main__":
    key = jax.random.PRNGKey(0)
    k_params, k_x, k_x2 = jax.random.split(key, 3)

    batch = 8
    adv_hidden = 32
    num_protected_label = 3

    w1, b1, w2, b2 = init_adversary_params(k_params, num_protected_label, adv_hidden)

    # Padded params prepared ONCE (hoisted out of the per-call path).
    params_f32 = prepare_adversary_params(w1, b1, w2, b2)

    x = jax.random.normal(k_x, (batch, DISTILBERT_HIDDEN), jnp.float32)
    ref = jnp.maximum(x @ w1 + b1, 0.0) @ w2 + b2

    # f32 streaming path (no wrapper-side copy of x).
    out = adversary_forward(x, *params_f32, num_protected_label)
    out = jax.block_until_ready(out)
    assert out.shape == (batch, num_protected_label)
    assert jnp.allclose(out, ref, atol=1e-4, rtol=1e-4), "f32 mismatch vs reference"

    # Ragged multi-step grid: B=72 with TB=32 -> grid=3, last block has only
    # 8 valid rows (masked DMA / writeback), exercising the cdiv grid.
    batch2 = 72
    x2 = jax.random.normal(k_x2, (batch2, DISTILBERT_HIDDEN), jnp.float32)
    ref2 = jnp.maximum(x2 @ w1 + b1, 0.0) @ w2 + b2
    out2 = adversary_forward(x2, *params_f32, num_protected_label, block_batch=32)
    out2 = jax.block_until_ready(out2)
    assert out2.shape == (batch2, num_protected_label)
    assert jnp.allclose(out2, ref2, atol=1e-4, rtol=1e-4), "ragged-grid mismatch vs reference"

    # bf16 path: only used when x already ARRIVES in bf16 (no wrapper cast of a
    # f32 x); bf16 output halves writeback bytes as well.
    params_bf16 = prepare_adversary_params(w1, b1, w2, b2, param_dtype=jnp.bfloat16)
    x_bf16 = x.astype(jnp.bfloat16)  # stands in for an upstream bf16 producer
    out_bf16 = adversary_forward(x_bf16, *params_bf16, num_protected_label,
                                 out_dtype=jnp.bfloat16)
    out_bf16 = jax.block_until_ready(out_bf16)
    assert out_bf16.shape == (batch, num_protected_label)
    assert jnp.allclose(out_bf16.astype(jnp.float32), ref,
                        atol=5e-2, rtol=5e-2), "bf16 mismatch vs reference"

    print("KERNEL_OK")
</pallas_src>

<mosaic_0001>
module attributes {stable_mosaic.version = 11 : i64} {
  func.func @_adversary_kernel(%arg0: i32, %arg1: memref<8x768xf32, #tpu.memory_space<vmem>>, %arg2: memref<768x128xf32, #tpu.memory_space<vmem>>, %arg3: memref<1x128xf32, #tpu.memory_space<vmem>>, %arg4: memref<128x128xf32, #tpu.memory_space<vmem>>, %arg5: memref<1x128xf32, #tpu.memory_space<vmem>>, %arg6: memref<8x128xf32, #tpu.memory_space<vmem>>) attributes {dimension_semantics = [#tpu.dimension_semantics<parallel>], iteration_bounds = array<i64: 1>, scalar_prefetch = 0 : i64, scratch_operands = 0 : i64, tpu.core_type = #tpu.core_type<tc>, window_params = [{transform_indices = @transform_0, window_bounds = array<i64: 8, 768>}, {pipeline_mode = #tpu.pipeline_mode<synchronous>, transform_indices = @transform_1, window_bounds = array<i64: 768, 128>}, {pipeline_mode = #tpu.pipeline_mode<synchronous>, transform_indices = @transform_2, window_bounds = array<i64: 1, 128>}, {pipeline_mode = #tpu.pipeline_mode<synchronous>, transform_indices = @transform_3, window_bounds = array<i64: 128, 128>}, {pipeline_mode = #tpu.pipeline_mode<synchronous>, transform_indices = @transform_4, window_bounds = array<i64: 1, 128>}, {transform_indices = @transform_5, window_bounds = array<i64: 8, 128>}]} {
    %c0 = arith.constant 0 : index
    %c0_0 = arith.constant 0 : index
    %0 = vector.load %arg1[%c0, %c0_0] : memref<8x768xf32, #tpu.memory_space<vmem>>, vector<8x768xf32>
    %c0_1 = arith.constant 0 : index
    %c0_2 = arith.constant 0 : index
    %1 = vector.load %arg2[%c0_1, %c0_2] : memref<768x128xf32, #tpu.memory_space<vmem>>, vector<768x128xf32>
    %cst = arith.constant dense<0.000000e+00> : vector<8x128xf32>
    %2 = tpu.matmul %0, %1, %cst {dimension_numbers = #tpu.dot_dimension_numbers<[1], [0], [0], [1], [0, 0, 1, 1], [], []>} : vector<8x768xf32>, vector<768x128xf32>, vector<8x128xf32> -> vector<8x128xf32>
    %c0_3 = arith.constant 0 : index
    %c0_4 = arith.constant 0 : index
    %3 = vector.load %arg3[%c0_3, %c0_4] : memref<1x128xf32, #tpu.memory_space<vmem>>, vector<1x128xf32>
    %4 = vector.broadcast %3 : vector<1x128xf32> to vector<8x128xf32>
    %5 = arith.addf %2, %4 : vector<8x128xf32>
    %cst_5 = arith.constant 0.000000e+00 : f32
    %6 = vector.broadcast %cst_5 : f32 to vector<8x128xf32>
    %7 = arith.maximumf %5, %6 : vector<8x128xf32>
    %c0_6 = arith.constant 0 : index
    %c0_7 = arith.constant 0 : index
    %8 = vector.load %arg4[%c0_6, %c0_7] : memref<128x128xf32, #tpu.memory_space<vmem>>, vector<128x128xf32>
    %cst_8 = arith.constant dense<0.000000e+00> : vector<8x128xf32>
    %9 = tpu.matmul %7, %8, %cst_8 {dimension_numbers = #tpu.dot_dimension_numbers<[1], [0], [0], [1], [0, 0, 1, 1], [], []>} : vector<8x128xf32>, vector<128x128xf32>, vector<8x128xf32> -> vector<8x128xf32>
    %c0_9 = arith.constant 0 : index
    %c0_10 = arith.constant 0 : index
    %10 = vector.load %arg5[%c0_9, %c0_10] : memref<1x128xf32, #tpu.memory_space<vmem>>, vector<1x128xf32>
    %11 = vector.broadcast %10 : vector<1x128xf32> to vector<8x128xf32>
    %12 = arith.addf %9, %11 : vector<8x128xf32>
    %c0_11 = arith.constant 0 : index
    %c0_12 = arith.constant 0 : index
    %13 = vector.load %arg6[%c0_11, %c0_12] : memref<8x128xf32, #tpu.memory_space<vmem>>, vector<8x128xf32>
    tpu.vector_store %arg6[%c0_11, %c0_12], %12 {strides = array<i32>} : memref<8x128xf32, #tpu.memory_space<vmem>>, vector<8x128xf32>,
    return
  }
  func.func @transform_0(%arg0: i32) -> (i32, i32) {
    %c0_i32 = arith.constant 0 : i32
    %c0_i32_0 = arith.constant 0 : i32
    return %arg0, %c0_i32 : i32, i32
  }
  func.func @transform_1(%arg0: i32) -> (i32, i32) {
    %c0_i32 = arith.constant 0 : i32
    %c0_i32_0 = arith.constant 0 : i32
    %c0_i32_1 = arith.constant 0 : i32
    return %c0_i32, %c0_i32_0 : i32, i32
  }
  func.func @transform_2(%arg0: i32) -> (i32, i32) {
    %c0_i32 = arith.constant 0 : i32
    %c0_i32_0 = arith.constant 0 : i32
    %c0_i32_1 = arith.constant 0 : i32
    return %c0_i32, %c0_i32_0 : i32, i32
  }
  func.func @transform_3(%arg0: i32) -> (i32, i32) {
    %c0_i32 = arith.constant 0 : i32
    %c0_i32_0 = arith.constant 0 : i32
    %c0_i32_1 = arith.constant 0 : i32
    return %c0_i32, %c0_i32_0 : i32, i32
  }
  func.func @transform_4(%arg0: i32) -> (i32, i32) {
    %c0_i32 = arith.constant 0 : i32
    %c0_i32_0 = arith.constant 0 : i32
    %c0_i32_1 = arith.constant 0 : i32
    return %c0_i32, %c0_i32_0 : i32, i32
  }
  func.func @transform_5(%arg0: i32) -> (i32, i32) {
    %c0_i32 = arith.constant 0 : i32
    %c0_i32_0 = arith.constant 0 : i32
    return %arg0, %c0_i32 : i32, i32
  }
}

</mosaic_0001>

<llo_original>
// kernel: tpu_custom_call.1
$region0: #{tpu_custom_call.1}
  #allocation0 [shape = 'u32[]', space=smem, size = 0x4, offset = 0x4, fixed_abs, tag = 'smem constant byte address 0x4 - core index']
  #allocation1 [shape = 'u32[144,128]{1,0:T(1,128)}', space=vmem, size = 0x12000, scoped, tag = 'internal scratch']
  %s0 = inlined_call_operand.hbm [shape: f32[8,768], index: 0, kind: input, shape index: {}]
  %s1 = inlined_call_operand.hbm [shape: f32[768,128], index: 1, kind: input, shape index: {}]
  %s2 = inlined_call_operand.vmem [shape: f32[1,128], index: 2, kind: input, shape index: {}]
  %s3 = inlined_call_operand.hbm [shape: f32[128,128], index: 3, kind: input, shape index: {}]
  %s4 = inlined_call_operand.vmem [shape: f32[1,128], index: 4, kind: input, shape index: {}]
  %s5 = inlined_call_operand.hbm [shape: f32[8,128], index: 5, kind: output, shape index: {}]
  %s6 = sld [smem:[#allocation0]]
  $region42: #{tpu_custom_call.1} parent=0
    _
  %s8 = ssub.s32 1, %s6
  %s9 = scalar_select 0, %s8, %s6
  $region1: #{tpu_custom_call.1} parent=0
    #allocation2 [shape = 'u8[24576]{0}', space=vmem, size = 0x6000, scoped, tag = 'input window, operand 0, single buffered']
    #allocation3 [shape = 's32[1]{0}', space=sflag, size = 0x4, scoped, tag = 'scoped memory for tpu_custom_call.1']
    #allocation4 [shape = 's32[1]{0}', space=sflag, size = 0x4, scoped, tag = 'scoped memory for tpu_custom_call.1']
    #allocation5 [shape = 'u8[393216]{0}', space=vmem, size = 0x60000, scoped, tag = 'input window, operand 1, single buffered']
    #allocation6 [shape = 's32[1]{0}', space=sflag, size = 0x4, scoped, tag = 'scoped memory for tpu_custom_call.1']
    #allocation7 [shape = 'u8[65536]{0}', space=vmem, size = 0x10000, scoped, tag = 'input window, operand 3, single buffered']
    #allocation8 [shape = 'u8[4096]{0}', space=vmem, size = 0x1000, scoped, tag = 'output window, operand 0, single buffered']
    %10 = vsyncpa [#allocation3], 0
    %11 = vsyncpa [#allocation6], 0
    %12 = vsyncpa [#allocation4], 0
    // Predicated region
    $region2: #{tpu_custom_call.1} parent=1 // pred_check
      _
    $region3: #{tpu_custom_call.1} parent=1 // pred_check_branch
      %14 = sbr.rel (0) target = $region5
    $region4: #{tpu_custom_call.1} parent=1 // pred_region
      %s16 = ssub.s32 768, 768
      %17 = vsyncadd [#allocation3], %s16
      %s19 = sshll.u32 [#allocation2], 4
      %s20 = int_to_ptr.vmem [resolvable:$true] %s19
      %22 = dma.hbm_to_vmem [thread:$0]  %s0, 768, %s20, [#allocation3]
    $region5: #{tpu_custom_call.1} parent=1 // pred_fallthru
      _
    // Predicated region
    $region6: #{tpu_custom_call.1} parent=1 // pred_check
      _
    $region7: #{tpu_custom_call.1} parent=1 // pred_check_branch
      %24 = sbr.rel (0) target = $region9
    $region8: #{tpu_custom_call.1} parent=1 // pred_region
      %s26 = ssub.s32 12288, 12288
      %27 = vsyncadd [#allocation6], %s26
      %s28 = sshll.u32 [#allocation5], 4
      %s29 = int_to_ptr.vmem [resolvable:$true] %s28
      %34 = dma.hbm_to_vmem [thread:$0]  %s1, 12288, %s29, [#allocation6], 128, 128, 8
    $region9: #{tpu_custom_call.1} parent=1 // pred_fallthru
      _
    // Predicated region
    $region10: #{tpu_custom_call.1} parent=1 // pred_check
      _
    $region11: #{tpu_custom_call.1} parent=1 // pred_check_branch
      %36 = sbr.rel (0) target = $region13
    $region12: #{tpu_custom_call.1} parent=1 // pred_region
      _
    $region13: #{tpu_custom_call.1} parent=1 // pred_fallthru
      _
    // Predicated region
    $region14: #{tpu_custom_call.1} parent=1 // pred_check
      _
    $region15: #{tpu_custom_call.1} parent=1 // pred_check_branch
      %38 = sbr.rel (0) target = $region17
    $region16: #{tpu_custom_call.1} parent=1 // pred_region
      %s40 = ssub.s32 2048, 2048
      %41 = vsyncadd [#allocation6], %s40
      %s42 = sshll.u32 [#allocation7], 4
      %s43 = int_to_ptr.vmem [resolvable:$true] %s42
      %48 = dma.hbm_to_vmem [thread:$0]  %s3, 2048, %s43, [#allocation6], 128, 128, 8
    $region17: #{tpu_custom_call.1} parent=1 // pred_fallthru
      _
    // Predicated region
    $region18: #{tpu_custom_call.1} parent=1 // pred_check
      _
    $region19: #{tpu_custom_call.1} parent=1 // pred_check_branch
      %50 = sbr.rel (0) target = $region21
    $region20: #{tpu_custom_call.1} parent=1 // pred_region
      _
    $region21: #{tpu_custom_call.1} parent=1 // pred_fallthru
      _
    // Predicated region
    $region22: #{tpu_custom_call.1} parent=1 // pred_check
      _
    $region23: #{tpu_custom_call.1} parent=1 // pred_check_branch
      %52 = sbr.rel (0) target = $region25
    $region24: #{tpu_custom_call.1} parent=1 // pred_region
      %53 = dma.done [#allocation3], 768
    $region25: #{tpu_custom_call.1} parent=1 // pred_fallthru
      _
    // Predicated region
    $region26: #{tpu_custom_call.1} parent=1 // pred_check
      _
    $region27: #{tpu_custom_call.1} parent=1 // pred_check_branch
      %55 = sbr.rel (0) target = $region29
    $region28: #{tpu_custom_call.1} parent=1 // pred_region
      %56 = dma.done [#allocation6], 12288
    $region29: #{tpu_custom_call.1} parent=1 // pred_fallthru
      _
    // Predicated region
    $region30: #{tpu_custom_call.1} parent=1 // pred_check
      _
    $region31: #{tpu_custom_call.1} parent=1 // pred_check_branch
      %58 = sbr.rel (0) target = $region33
    $region32: #{tpu_custom_call.1} parent=1 // pred_region
      %59 = dma.done [#allocation6], 2048
    $region33: #{tpu_custom_call.1} parent=1 // pred_fallthru
      _
    %v60 = vld [vmem:[#allocation2] sm:$0xff]
    %v61 = vld [vmem:[#allocation2 + $0x8] sm:$0xff]
    %v62 = vld [vmem:[#allocation2 + $0x10] sm:$0xff]
    %v63 = vld [vmem:[#allocation2 + $0x18] sm:$0xff]
    %v64 = vld [vmem:[#allocation2 + $0x20] sm:$0xff]
    %v65 = vld [vmem:[#allocation2 + $0x28] sm:$0xff]
    %v66 = vld [vmem:[#allocation5] sm:$0xff]
    %v67 = vld [vmem:[#allocation5 + $0x8] sm:$0xff]
    %v68 = vld [vmem:[#allocation5 + $0x10] sm:$0xff]
    %v69 = vld [vmem:[#allocation5 + $0x18] sm:$0xff]
    %v70 = vld [vmem:[#allocation5 + $0x20] sm:$0xff]
    %v71 = vld [vmem:[#allocation5 + $0x28] sm:$0xff]
    %v72 = vld [vmem:[#allocation5 + $0x30] sm:$0xff]
    %v73 = vld [vmem:[#allocation5 + $0x38] sm:$0xff]
    %v74 = vld [vmem:[#allocation5 + $0x40] sm:$0xff]
    %v75 = vld [vmem:[#allocation5 + $0x48] sm:$0xff]
    %v76 = vld [vmem:[#allocation5 + $0x50] sm:$0xff]
    %v77 = vld [vmem:[#allocation5 + $0x58] sm:$0xff]
    %v78 = vld [vmem:[#allocation5 + $0x60] sm:$0xff]
    %v79 = vld [vmem:[#allocation5 + $0x68] sm:$0xff]
    %v80 = vld [vmem:[#allocation5 + $0x70] sm:$0xff]
    %v81 = vld [vmem:[#allocation5 + $0x78] sm:$0xff]
    %v82 = vld [vmem:[#allocation5 + $0x80] sm:$0xff]
    %v83 = vld [vmem:[#allocation5 + $0x88] sm:$0xff]
    %v84 = vld [vmem:[#allocation5 + $0x90] sm:$0xff]
    %v85 = vld [vmem:[#allocation5 + $0x98] sm:$0xff]
    %v86 = vld [vmem:[#allocation5 + $0xa0] sm:$0xff]
    %v87 = vld [vmem:[#allocation5 + $0xa8] sm:$0xff]
    %v88 = vld [vmem:[#allocation5 + $0xb0] sm:$0xff]
    %v89 = vld [vmem:[#allocation5 + $0xb8] sm:$0xff]
    %v90 = vld [vmem:[#allocation5 + $0xc0] sm:$0xff]
    %v91 = vld [vmem:[#allocation5 + $0xc8] sm:$0xff]
    %v92 = vld [vmem:[#allocation5 + $0xd0] sm:$0xff]
    %v93 = vld [vmem:[#allocation5 + $0xd8] sm:$0xff]
    %v94 = vld [vmem:[#allocation5 + $0xe0] sm:$0xff]
    %v95 = vld [vmem:[#allocation5 + $0xe8] sm:$0xff]
    %v96 = vld [vmem:[#allocation5 + $0xf0] sm:$0xff]
    %v97 = vld [vmem:[#allocation5 + $0xf8] sm:$0xff]
    %v98 = vld [vmem:[#allocation5 + $0x100] sm:$0xff]
    %v99 = vld [vmem:[#allocation5 + $0x108] sm:$0xff]
    %v100 = vld [vmem:[#allocation5 + $0x110] sm:$0xff]
    %v101 = vld [vmem:[#allocation5 + $0x118] sm:$0xff]
    %v102 = vld [vmem:[#allocation5 + $0x120] sm:$0xff]
    %v103 = vld [vmem:[#allocation5 + $0x128] sm:$0xff]
    %v104 = vld [vmem:[#allocation5 + $0x130] sm:$0xff]
    %v105 = vld [vmem:[#allocation5 + $0x138] sm:$0xff]
    %v106 = vld [vmem:[#allocation5 + $0x140] sm:$0xff]
    %v107 = vld [vmem:[#allocation5 + $0x148] sm:$0xff]
    %v108 = vld [vmem:[#allocation5 + $0x150] sm:$0xff]
    %v109 = vld [vmem:[#allocation5 + $0x158] sm:$0xff]
    %v110 = vld [vmem:[#allocation5 + $0x160] sm:$0xff]
    %v111 = vld [vmem:[#allocation5 + $0x168] sm:$0xff]
    %v112 = vld [vmem:[#allocation5 + $0x170] sm:$0xff]
    %v113 = vld [vmem:[#allocation5 + $0x178] sm:$0xff]
    %v114 = vld [vmem:[#allocation5 + $0x180] sm:$0xff]
    %v115 = vld [vmem:[#allocation5 + $0x188] sm:$0xff]
    %v116 = vld [vmem:[#allocation5 + $0x190] sm:$0xff]
    %v117 = vld [vmem:[#allocation5 + $0x198] sm:$0xff]
    %v118 = vld [vmem:[#allocation5 + $0x1a0] sm:$0xff]
    %v119 = vld [vmem:[#allocation5 + $0x1a8] sm:$0xff]
    %v120 = vld [vmem:[#allocation5 + $0x1b0] sm:$0xff]
    %v121 = vld [vmem:[#allocation5 + $0x1b8] sm:$0xff]
    %v122 = vld [vmem:[#allocation5 + $0x1c0] sm:$0xff]
    %v123 = vld [vmem:[#allocation5 + $0x1c8] sm:$0xff]
    %v124 = vld [vmem:[#allocation5 + $0x1d0] sm:$0xff]
    %v125 = vld [vmem:[#allocation5 + $0x1d8] sm:$0xff]
    %v126 = vld [vmem:[#allocation5 + $0x1e0] sm:$0xff]
    %v127 = vld [vmem:[#allocation5 + $0x1e8] sm:$0xff]
    %v128 = vld [vmem:[#allocation5 + $0x1f0] sm:$0xff]
    %v129 = vld [vmem:[#allocation5 + $0x1f8] sm:$0xff]
    %v130 = vld [vmem:[#allocation5 + $0x200] sm:$0xff]
    %v131 = vld [vmem:[#allocation5 + $0x208] sm:$0xff]
    %v132 = vld [vmem:[#allocation5 + $0x210] sm:$0xff]
    %v133 = vld [vmem:[#allocation5 + $0x218] sm:$0xff]
    %v134 = vld [vmem:[#allocation5 + $0x220] sm:$0xff]
    %v135 = vld [vmem:[#allocation5 + $0x228] sm:$0xff]
    %v136 = vld [vmem:[#allocation5 + $0x230] sm:$0xff]
    %v137 = vld [vmem:[#allocation5 + $0x238] sm:$0xff]
    %v138 = vld [vmem:[#allocation5 + $0x240] sm:$0xff]
    %v139 = vld [vmem:[#allocation5 + $0x248] sm:$0xff]
    %v140 = vld [vmem:[#allocation5 + $0x250] sm:$0xff]
    %v141 = vld [vmem:[#allocation5 + $0x258] sm:$0xff]
    %v142 = vld [vmem:[#allocation5 + $0x260] sm:$0xff]
    %v143 = vld [vmem:[#allocation5 + $0x268] sm:$0xff]
    %v144 = vld [vmem:[#allocation5 + $0x270] sm:$0xff]
    %v145 = vld [vmem:[#allocation5 + $0x278] sm:$0xff]
    %v146 = vld [vmem:[#allocation5 + $0x280] sm:$0xff]
    %v147 = vld [vmem:[#allocation5 + $0x288] sm:$0xff]
    %v148 = vld [vmem:[#allocation5 + $0x290] sm:$0xff]
    %v149 = vld [vmem:[#allocation5 + $0x298] sm:$0xff]
    %v150 = vld [vmem:[#allocation5 + $0x2a0] sm:$0xff]
    %v151 = vld [vmem:[#allocation5 + $0x2a8] sm:$0xff]
    %v152 = vld [vmem:[#allocation5 + $0x2b0] sm:$0xff]
    %v153 = vld [vmem:[#allocation5 + $0x2b8] sm:$0xff]
    %v154 = vld [vmem:[#allocation5 + $0x2c0] sm:$0xff]
    %v155 = vld [vmem:[#allocation5 + $0x2c8] sm:$0xff]
    %v156 = vld [vmem:[#allocation5 + $0x2d0] sm:$0xff]
    %v157 = vld [vmem:[#allocation5 + $0x2d8] sm:$0xff]
    %v158 = vld [vmem:[#allocation5 + $0x2e0] sm:$0xff]
    %v159 = vld [vmem:[#allocation5 + $0x2e8] sm:$0xff]
    %v160 = vld [vmem:[#allocation5 + $0x2f0] sm:$0xff]
    %v161 = vld [vmem:[#allocation5 + $0x2f8] sm:$0xff]
    %v162 = vld [vmem:[%s2] sm:$0x1]
    %v164 = vlaneseq
    %v165 = vshrl.u32 %v164, 7
    %v166 = vsub.s32 0, %v165
    %v167 = vrot.slane %v162, %v166
    %169 = vmatprep.subr.mxu0 0.0
    %170 = vmatpush1.msra.mxu0 %v66
    %171 = vmatprep.subr.mxu0 0.0
    %172 = vmatpush1.msra.mxu0 %v67
    %173 = vmatprep.subr.mxu0 0.0
    %174 = vmatpush1.msra.mxu0 %v68
    %175 = vmatprep.subr.mxu0 0.0
    %176 = vmatpush1.msra.mxu0 %v69
    %177 = vmatprep.subr.mxu0 0.0
    %178 = vmatpush1.msra.mxu0 %v70
    %179 = vmatprep.subr.mxu0 0.0
    %180 = vmatpush1.msra.mxu0 %v71
    %181 = vmatprep.subr.mxu0 0.0
    %182 = vmatpush1.msra.mxu0 %v72
    %183 = vmatprep.subr.mxu0 0.0
    %184 = vmatpush1.msra.mxu0 %v73
    %185 = vmatprep.subr.mxu0 0.0
    %186 = vmatpush1.msra.mxu0 %v74
    %187 = vmatprep.subr.mxu0 0.0
    %188 = vmatpush1.msra.mxu0 %v75
    %189 = vmatprep.subr.mxu0 0.0
    %190 = vmatpush1.msra.mxu0 %v76
    %191 = vmatprep.subr.mxu0 0.0
    %192 = vmatpush1.msra.mxu0 %v77
    %193 = vmatprep.subr.mxu0 0.0
    %194 = vmatpush1.msra.mxu0 %v78
    %195 = vmatprep.subr.mxu0 0.0
    %196 = vmatpush1.msra.mxu0 %v79
    %197 = vmatprep.subr.mxu0 0.0
    %198 = vmatpush1.msra.mxu0 %v80
    %199 = vmatprep.subr.mxu0 0.0
    %200 = vmatpush1.msra.mxu0 %v81
    %201 = vmatprep.subr.mxu0 0.0
    %202 = vmatpush1.msra.mxu0 %v82
    %203 = vmatprep.subr.mxu0 0.0
    %204 = vmatpush1.msra.mxu0 %v83
    %205 = vmatprep.subr.mxu0 0.0
    %206 = vmatpush1.msra.mxu0 %v84
    %207 = vmatprep.subr.mxu0 0.0
    %208 = vmatpush1.msra.mxu0 %v85
    %209 = vmatprep.subr.mxu0 0.0
    %210 = vmatpush1.msra.mxu0 %v86
    %211 = vmatprep.subr.mxu0 0.0
    %212 = vmatpush1.msra.mxu0 %v87
    %213 = vmatprep.subr.mxu0 0.0
    %214 = vmatpush1.msra.mxu0 %v88
    %215 = vmatprep.subr.mxu0 0.0
    %216 = vmatpush1.msra.mxu0 %v89
    %217 = vmatprep.subr.mxu0 0.0
    %218 = vmatpush1.msra.mxu0 %v90
    %219 = vmatprep.subr.mxu0 0.0
    %220 = vmatpush1.msra.mxu0 %v91
    %221 = vmatprep.subr.mxu0 0.0
    %222 = vmatpush1.msra.mxu0 %v92
    %223 = vmatprep.subr.mxu0 0.0
    %224 = vmatpush1.msra.mxu0 %v93
    %225 = vmatprep.subr.mxu0 0.0
    %226 = vmatpush1.msra.mxu0 %v94
    %227 = vmatprep.subr.mxu0 0.0
    %228 = vmatpush1.msra.mxu0 %v95
    %229 = vmatprep.subr.mxu0 0.0
    %230 = vmatpush1.msra.mxu0 %v96
    %231 = vmatprep.subr.mxu0 0.0
    %232 = vmatpush1.msra.mxu0 %v97
    %233 = vmatprep.mubr.f32.mxu0 %v61
    %234 = vmatmul.mubr.f32.gmra.mrb[0].mxu0 %v60
    %v235 = vpop.f32.mrb[0].mxu0
    %v236 = vadd.f32 %v167, %v235
    %v237 = vpop.f32.mrb[0].mxu0
    %238 = vdwg.mxu0
    %239 = vmatprep.subr.mxu0 0.0
    %240 = vmatpush1.msra.mxu0 %v98
    %241 = vmatprep.subr.mxu0 0.0
    %242 = vmatpush1.msra.mxu0 %v99
    %243 = vmatprep.subr.mxu0 0.0
    %244 = vmatpush1.msra.mxu0 %v100
    %245 = vmatprep.subr.mxu0 0.0
    %246 = vmatpush1.msra.mxu0 %v101
    %247 = vmatprep.subr.mxu0 0.0
    %248 = vmatpush1.msra.mxu0 %v102
    %249 = vmatprep.subr.mxu0 0.0
    %250 = vmatpush1.msra.mxu0 %v103
    %251 = vmatprep.subr.mxu0 0.0
    %252 = vmatpush1.msra.mxu0 %v104
    %253 = vmatprep.subr.mxu0 0.0
    %254 = vmatpush1.msra.mxu0 %v105
    %255 = vmatprep.subr.mxu0 0.0
    %256 = vmatpush1.msra.mxu0 %v106
    %257 = vmatprep.subr.mxu0 0.0
    %258 = vmatpush1.msra.mxu0 %v107
    %259 = vmatprep.subr.mxu0 0.0
    %260 = vmatpush1.msra.mxu0 %v108
    %261 = vmatprep.subr.mxu0 0.0
    %262 = vmatpush1.msra.mxu0 %v109
    %263 = vmatprep.subr.mxu0 0.0
    %264 = vmatpush1.msra.mxu0 %v110
    %265 = vmatprep.subr.mxu0 0.0
    %266 = vmatpush1.msra.mxu0 %v111
    %267 = vmatprep.subr.mxu0 0.0
    %268 = vmatpush1.msra.mxu0 %v112
    %269 = vmatprep.subr.mxu0 0.0
    %270 = vmatpush1.msra.mxu0 %v113
    %271 = vmatprep.subr.mxu0 0.0
    %272 = vmatpush1.msra.mxu0 %v114
    %273 = vmatprep.subr.mxu0 0.0
    %274 = vmatpush1.msra.mxu0 %v115
    %275 = vmatprep.subr.mxu0 0.0
    %276 = vmatpush1.msra.mxu0 %v116
    %277 = vmatprep.subr.mxu0 0.0
    %278 = vmatpush1.msra.mxu0 %v117
    %279 = vmatprep.subr.mxu0 0.0
    %280 = vmatpush1.msra.mxu0 %v118
    %281 = vmatprep.subr.mxu0 0.0
    %282 = vmatpush1.msra.mxu0 %v119
    %283 = vmatprep.subr.mxu0 0.0
    %284 = vmatpush1.msra.mxu0 %v120
    %285 = vmatprep.subr.mxu0 0.0
    %286 = vmatpush1.msra.mxu0 %v121
    %287 = vmatprep.subr.mxu0 0.0
    %288 = vmatpush1.msra.mxu0 %v122
    %289 = vmatprep.subr.mxu0 0.0
    %290 = vmatpush1.msra.mxu0 %v123
    %291 = vmatprep.subr.mxu0 0.0
    %292 = vmatpush1.msra.mxu0 %v124
    %293 = vmatprep.subr.mxu0 0.0
    %294 = vmatpush1.msra.mxu0 %v125
    %295 = vmatprep.subr.mxu0 0.0
    %296 = vmatpush1.msra.mxu0 %v126
    %297 = vmatprep.subr.mxu0 0.0
    %298 = vmatpush1.msra.mxu0 %v127
    %299 = vmatprep.subr.mxu0 0.0
    %300 = vmatpush1.msra.mxu0 %v128
    %301 = vmatprep.subr.mxu0 0.0
    %302 = vmatpush1.msra.mxu0 %v129
    %303 = vmatprep.mubr.f32.mxu0 %v63
    %304 = vmatmul.mubr.f32.gmra.mrb[0].mxu0 %v62
    %v305 = vpop.f32.mrb[0].mxu0
    %v306 = vadd.f32 %v236, %v305
    %v307 = vpop.f32.mrb[0].mxu0
    %308 = vdwg.mxu0
    %309 = vmatprep.subr.mxu0 0.0
    %310 = vmatpush1.msra.mxu0 %v130
    %311 = vmatprep.subr.mxu0 0.0
    %312 = vmatpush1.msra.mxu0 %v131
    %313 = vmatprep.subr.mxu0 0.0
    %314 = vmatpush1.msra.mxu0 %v132
    %315 = vmatprep.subr.mxu0 0.0
    %316 = vmatpush1.msra.mxu0 %v133
    %317 = vmatprep.subr.mxu0 0.0
    %318 = vmatpush1.msra.mxu0 %v134
    %319 = vmatprep.subr.mxu0 0.0
    %320 = vmatpush1.msra.mxu0 %v135
    %321 = vmatprep.subr.mxu0 0.0
    %322 = vmatpush1.msra.mxu0 %v136
    %323 = vmatprep.subr.mxu0 0.0
    %324 = vmatpush1.msra.mxu0 %v137
    %325 = vmatprep.subr.mxu0 0.0
    %326 = vmatpush1.msra.mxu0 %v138
    %327 = vmatprep.subr.mxu0 0.0
    %328 = vmatpush1.msra.mxu0 %v139
    %329 = vmatprep.subr.mxu0 0.0
    %330 = vmatpush1.msra.mxu0 %v140
    %331 = vmatprep.subr.mxu0 0.0
    %332 = vmatpush1.msra.mxu0 %v141
    %333 = vmatprep.subr.mxu0 0.0
    %334 = vmatpush1.msra.mxu0 %v142
    %335 = vmatprep.subr.mxu0 0.0
    %336 = vmatpush1.msra.mxu0 %v143
    %337 = vmatprep.subr.mxu0 0.0
    %338 = vmatpush1.msra.mxu0 %v144
    %339 = vmatprep.subr.mxu0 0.0
    %340 = vmatpush1.msra.mxu0 %v145
    %341 = vmatprep.subr.mxu0 0.0
    %342 = vmatpush1.msra.mxu0 %v146
    %343 = vmatprep.subr.mxu0 0.0
    %344 = vmatpush1.msra.mxu0 %v147
    %345 = vmatprep.subr.mxu0 0.0
    %346 = vmatpush1.msra.mxu0 %v148
    %347 = vmatprep.subr.mxu0 0.0
    %348 = vmatpush1.msra.mxu0 %v149
    %349 = vmatprep.subr.mxu0 0.0
    %350 = vmatpush1.msra.mxu0 %v150
    %351 = vmatprep.subr.mxu0 0.0
    %352 = vmatpush1.msra.mxu0 %v151
    %353 = vmatprep.subr.mxu0 0.0
    %354 = vmatpush1.msra.mxu0 %v152
    %355 = vmatprep.subr.mxu0 0.0
    %356 = vmatpush1.msra.mxu0 %v153
    %357 = vmatprep.subr.mxu0 0.0
    %358 = vmatpush1.msra.mxu0 %v154
    %359 = vmatprep.subr.mxu0 0.0
    %360 = vmatpush1.msra.mxu0 %v155
    %361 = vmatprep.subr.mxu0 0.0
    %362 = vmatpush1.msra.mxu0 %v156
    %363 = vmatprep.subr.mxu0 0.0
    %364 = vmatpush1.msra.mxu0 %v157
    %365 = vmatprep.subr.mxu0 0.0
    %366 = vmatpush1.msra.mxu0 %v158
    %367 = vmatprep.subr.mxu0 0.0
    %368 = vmatpush1.msra.mxu0 %v159
    %369 = vmatprep.subr.mxu0 0.0
    %370 = vmatpush1.msra.mxu0 %v160
    %371 = vmatprep.subr.mxu0 0.0
    %372 = vmatpush1.msra.mxu0 %v161
    %373 = vmatprep.mubr.f32.mxu0 %v65
    %374 = vmatmul.mubr.f32.gmra.mrb[0].mxu0 %v64
    %v375 = vpop.f32.mrb[0].mxu0
    %v376 = vadd.f32 %v306, %v375
    %v377 = vpop.f32.mrb[0].mxu0
    %378 = vdwg.mxu0
    %v379 = vmax.f32 %v376, 0.0
    %v380 = vld [vmem:[#allocation7] sm:$0xff]
    %v381 = vld [vmem:[#allocation7 + $0x8] sm:$0xff]
    %v382 = vld [vmem:[#allocation7 + $0x10] sm:$0xff]
    %v383 = vld [vmem:[#allocation7 + $0x18] sm:$0xff]
    %v384 = vld [vmem:[#allocation7 + $0x20] sm:$0xff]
    %v385 = vld [vmem:[#allocation7 + $0x28] sm:$0xff]
    %v386 = vld [vmem:[#allocation7 + $0x30] sm:$0xff]
    %v387 = vld [vmem:[#allocation7 + $0x38] sm:$0xff]
    %v388 = vld [vmem:[#allocation7 + $0x40] sm:$0xff]
    %v389 = vld [vmem:[#allocation7 + $0x48] sm:$0xff]
    %v390 = vld [vmem:[#allocation7 + $0x50] sm:$0xff]
    %v391 = vld [vmem:[#allocation7 + $0x58] sm:$0xff]
    %v392 = vld [vmem:[#allocation7 + $0x60] sm:$0xff]
    %v393 = vld [vmem:[#allocation7 + $0x68] sm:$0xff]
    %v394 = vld [vmem:[#allocation7 + $0x70] sm:$0xff]
    %v395 = vld [vmem:[#allocation7 + $0x78] sm:$0xff]
    %v396 = vld [vmem:[%s4] sm:$0x1]
    %v398 = vlaneseq
    %v399 = vshrl.u32 %v398, 7
    %v400 = vsub.s32 0, %v399
    %v401 = vrot.slane %v396, %v400
    %403 = vmatprep.subr.mxu0 0.0
    %404 = vmatpush1.msra.mxu0 %v380
    %405 = vmatprep.subr.mxu0 0.0
    %406 = vmatpush1.msra.mxu0 %v381
    %407 = vmatprep.subr.mxu0 0.0
    %408 = vmatpush1.msra.mxu0 %v382
    %409 = vmatprep.subr.mxu0 0.0
    %410 = vmatpush1.msra.mxu0 %v383
    %411 = vmatprep.subr.mxu0 0.0
    %412 = vmatpush1.msra.mxu0 %v384
    %413 = vmatprep.subr.mxu0 0.0
    %414 = vmatpush1.msra.mxu0 %v385
    %415 = vmatprep.subr.mxu0 0.0
    %416 = vmatpush1.msra.mxu0 %v386
    %417 = vmatprep.subr.mxu0 0.0
    %418 = vmatpush1.msra.mxu0 %v387
    %419 = vmatprep.subr.mxu0 0.0
    %420 = vmatpush1.msra.mxu0 %v388
    %421 = vmatprep.subr.mxu0 0.0
    %422 = vmatpush1.msra.mxu0 %v389
    %423 = vmatprep.subr.mxu0 0.0
    %424 = vmatpush1.msra.mxu0 %v390
    %425 = vmatprep.subr.mxu0 0.0
    %426 = vmatpush1.msra.mxu0 %v391
    %427 = vmatprep.subr.mxu0 0.0
    %428 = vmatpush1.msra.mxu0 %v392
    %429 = vmatprep.subr.mxu0 0.0
    %430 = vmatpush1.msra.mxu0 %v393
    %431 = vmatprep.subr.mxu0 0.0
    %432 = vmatpush1.msra.mxu0 %v394
    %433 = vmatprep.subr.mxu0 0.0
    %434 = vmatpush1.msra.mxu0 %v395
    %435 = vmatprep.subr.mxu0 0.0
    %436 = vmatpush1.msra.mxu0 0.0
    %437 = vmatprep.subr.mxu0 0.0
    %438 = vmatpush1.msra.mxu0 0.0
    %439 = vmatprep.subr.mxu0 0.0
    %440 = vmatpush1.msra.mxu0 0.0
    %441 = vmatprep.subr.mxu0 0.0
    %442 = vmatpush1.msra.mxu0 0.0
    %443 = vmatprep.subr.mxu0 0.0
    %444 = vmatpush1.msra.mxu0 0.0
    %445 = vmatprep.subr.mxu0 0.0
    %446 = vmatpush1.msra.mxu0 0.0
    %447 = vmatprep.subr.mxu0 0.0
    %448 = vmatpush1.msra.mxu0 0.0
    %449 = vmatprep.subr.mxu0 0.0
    %450 = vmatpush1.msra.mxu0 0.0
    %451 = vmatprep.subr.mxu0 0.0
    %452 = vmatpush1.msra.mxu0 0.0
    %453 = vmatprep.subr.mxu0 0.0
    %454 = vmatpush1.msra.mxu0 0.0
    %455 = vmatprep.subr.mxu0 0.0
    %456 = vmatpush1.msra.mxu0 0.0
    %457 = vmatprep.subr.mxu0 0.0
    %458 = vmatpush1.msra.mxu0 0.0
    %459 = vmatprep.subr.mxu0 0.0
    %460 = vmatpush1.msra.mxu0 0.0
    %461 = vmatprep.subr.mxu0 0.0
    %462 = vmatpush1.msra.mxu0 0.0
    %463 = vmatprep.subr.mxu0 0.0
    %464 = vmatpush1.msra.mxu0 0.0
    %465 = vmatprep.subr.mxu0 0.0
    %466 = vmatpush1.msra.mxu0 0.0
    %467 = vmatprep.mubr.f32.mxu0 0.0
    %468 = vmatmul.mubr.f32.gmra.mrb[0].mxu0 %v379
    %v469 = vpop.f32.mrb[0].mxu0
    %v470 = vadd.f32 %v401, %v469
    %v471 = vpop.f32.mrb[0].mxu0
    %472 = vdwg.mxu0
    %473 = vst [vmem:[#allocation8] sm:$0xff] %v470
    // Predicated region
    $region34: #{tpu_custom_call.1} parent=1 // pred_check
      _
    $region35: #{tpu_custom_call.1} parent=1 // pred_check_branch
      %475 = sbr.rel (0) target = $region37
    $region36: #{tpu_custom_call.1} parent=1 // pred_region
      %s477 = ssub.s32 128, 128
      %478 = vsyncadd [#allocation4], %s477
      %s480 = sshll.u32 [#allocation8], 4
      %s481 = int_to_ptr.vmem [resolvable:$true] %s480
      %483 = dma.vmem_to_hbm [thread:$0]  %s481, 128, %s5, [#allocation4]
    $region37: #{tpu_custom_call.1} parent=1 // pred_fallthru
      _
    // Predicated region
    $region38: #{tpu_custom_call.1} parent=1 // pred_check
      _
    $region39: #{tpu_custom_call.1} parent=1 // pred_check_branch
      %485 = sbr.rel (0) target = $region41
    $region40: #{tpu_custom_call.1} parent=1 // pred_region
      %486 = dma.done [#allocation4], 128
    $region41: #{tpu_custom_call.1} parent=1 // pred_fallthru
      _
    %487 = vsyncpa [#allocation3], 1
    %488 = vsyncpa [#allocation6], 1
    %489 = vsyncpa [#allocation4], 1

</llo_original>
